<compile_context>
chip_gen: v6e
topology: v6e:2x2x1
jax: 0.10.0
libtpu: 0.0.40
codegen_flags: <defaults>
</compile_context>

<pallas_src>
import functools

import jax
import jax.numpy as jnp
from jax.experimental import pallas as pl
from jax.experimental.pallas import tpu as pltpu


def _round_up(n, m):
    return ((n + m - 1) // m) * m


def _pad2(a, rows, cols, dtype):
    a = a.astype(dtype)
    return jnp.pad(a, ((0, rows - a.shape[0]), (0, cols - a.shape[1])))


def adv_net_kernel(x_ref, w1_ref, b1_ref, w2_ref, b2_ref, w3t_ref, b3_ref,
                   o_ref, h1_acc):
    """Grid = (batch tiles [parallel], feature tiles [arbitrary/reduction])."""
    k = pl.program_id(1)

    # --- layer 1: accumulate the x-tile @ W1-tile partial product over F ---
    @pl.when(k == 0)
    def _():
        h1_acc[...] = jnp.zeros_like(h1_acc)

    h1_acc[...] += jnp.dot(x_ref[...], w1_ref[...],
                           preferred_element_type=jnp.float32)

    # --- epilogue: layers 2 & 3 once the full F reduction is in the scratch ---
    @pl.when(k == pl.num_programs(1) - 1)
    def _():
        # layer 1 bias + ReLU (dropout = identity at inference)
        h1 = jnp.maximum(h1_acc[...] + b1_ref[...], 0.0)

        # layer 2: bf16 MXU matmul, f32 accumulation, bias + ReLU
        h2 = jnp.dot(h1.astype(w2_ref.dtype), w2_ref[...],
                     preferred_element_type=jnp.float32)
        h2 = jnp.maximum(h2 + b2_ref[...], 0.0)

        # layer 3 (H -> 1): VPU multiply + XLU lane reduction instead of an
        # N=1 MXU matmul (which would use a single output column).
        y = jnp.sum(h2 * w3t_ref[...], axis=-1, keepdims=True) + b3_ref[...]

        # sigmoid: exp on the EUP, approximate reciprocal also on the EUP.
        o_ref[...] = pl.reciprocal(1.0 + jnp.exp(-y), approx=True).astype(o_ref.dtype)


@functools.partial(jax.jit, static_argnames=("tb", "tf"))
def adversarial_network_forward(x, params, *, tb=None, tf=None):
    w1, b1, w2, b2, w3, b3 = params
    B, F = x.shape
    H = w1.shape[1]

    # Lane/sublane-aligned padded sizes and tile choices.
    Hp = _round_up(H, 128)
    TB = tb if tb is not None else (128 if B >= 128 else _round_up(B, 8))
    Bp = _round_up(B, TB)
    TF = tf if tf is not None else min(_round_up(F, 128), 2048)
    Fp = _round_up(F, TF)

    # Zero-pad. Padded features / hidden units contribute exactly nothing
    # (zero weight rows/cols, zero bias, ReLU(0)=0), so outputs are unchanged.
    x_p = _pad2(x, Bp, Fp, jnp.bfloat16)
    w1_p = _pad2(w1, Fp, Hp, jnp.bfloat16)
    w2_p = _pad2(w2, Hp, Hp, jnp.bfloat16)
    b1_p = _pad2(b1.reshape(1, -1), 1, Hp, jnp.float32)
    b2_p = _pad2(b2.reshape(1, -1), 1, Hp, jnp.float32)
    w3t_p = _pad2(w3.reshape(1, -1), 1, Hp, jnp.float32)   # (H,1) -> row (1,Hp)
    b3_p = b3.reshape(1, 1).astype(jnp.float32)

    grid = (Bp // TB, Fp // TF)

    out = pl.pallas_call(
        adv_net_kernel,
        out_shape=jax.ShapeDtypeStruct((Bp, 1), jnp.float32),
        grid_spec=pltpu.PrefetchScalarGridSpec(
            num_scalar_prefetch=0,
            grid=grid,
            in_specs=[
                pl.BlockSpec((TB, TF), lambda i, k: (i, k)),   # x tile
                pl.BlockSpec((TF, Hp), lambda i, k: (k, 0)),   # W1 tile (streams over F)
                pl.BlockSpec((1, Hp), lambda i, k: (0, 0)),    # b1
                pl.BlockSpec((Hp, Hp), lambda i, k: (0, 0)),   # W2 (resident)
                pl.BlockSpec((1, Hp), lambda i, k: (0, 0)),    # b2
                pl.BlockSpec((1, Hp), lambda i, k: (0, 0)),    # W3^T row
                pl.BlockSpec((1, 1), lambda i, k: (0, 0)),     # b3
            ],
            out_specs=pl.BlockSpec((TB, 1), lambda i, k: (i, 0)),
            scratch_shapes=[pltpu.VMEM((TB, Hp), jnp.float32)],  # h1 accumulator
        ),
        compiler_params=pltpu.CompilerParams(
            dimension_semantics=("parallel", "arbitrary"),
            vmem_limit_bytes=48 * 1024 * 1024,  # fits v7x's 64 MiB physical VMEM
        ),
    )(x_p, w1_p, b1_p, w2_p, b2_p, w3t_p, b3_p)

    return out[:B]


def init_params(key, in_feature, hidden_size):
    """Xavier-normal weights, zero biases (matches init_weights for Linear)."""
    k1, k2, k3 = jax.random.split(key, 3)

    def xavier_normal(k, fan_in, fan_out):
        std = jnp.sqrt(2.0 / (fan_in + fan_out))
        return (std * jax.random.normal(k, (fan_in, fan_out))).astype(jnp.float32)

    w1 = xavier_normal(k1, in_feature, hidden_size)
    b1 = jnp.zeros((hidden_size,), jnp.float32)
    w2 = xavier_normal(k2, hidden_size, hidden_size)
    b2 = jnp.zeros((hidden_size,), jnp.float32)
    w3 = xavier_normal(k3, hidden_size, 1)
    b3 = jnp.zeros((1,), jnp.float32)
    return (w1, b1, w2, b2, w3, b3)


if __name__ == "__main__":
    key = jax.random.PRNGKey(0)
    k_x, k_p = jax.random.split(key)

    batch = 8
    in_feature = 64
    hidden_size = 32

    x = jax.random.normal(k_x, (batch, in_feature), dtype=jnp.float32)
    params = init_params(k_p, in_feature, hidden_size)

    y = adversarial_network_forward(x, params)
    jax.block_until_ready(y)
    assert y.shape == (batch, 1)

    # Reference in plain JAX, mirroring the kernel's bf16 matmul operands with
    # f32 accumulation (layer 3 stays f32 in both).
    w1, b1, w2, b2, w3, b3 = params
    h1 = jnp.maximum(
        jnp.dot(x.astype(jnp.bfloat16), w1.astype(jnp.bfloat16),
                preferred_element_type=jnp.float32) + b1.reshape(1, -1), 0.0)
    h2 = jnp.maximum(
        jnp.dot(h1.astype(jnp.bfloat16), w2.astype(jnp.bfloat16),
                preferred_element_type=jnp.float32) + b2.reshape(1, -1), 0.0)
    y_ref = jax.nn.sigmoid(h2 @ w3 + b3.reshape(1, 1))

    assert jnp.allclose(y, y_ref, atol=5e-3), "mismatch vs reference"

    print("KERNEL_OK")
</pallas_src>

<mosaic_0001>
module attributes {stable_mosaic.version = 11 : i64} {
  func.func @adv_net_kernel(%arg0: i32, %arg1: i32, %arg2: memref<8x128xbf16, #tpu.memory_space<vmem>>, %arg3: memref<128x128xbf16, #tpu.memory_space<vmem>>, %arg4: memref<1x128xf32, #tpu.memory_space<vmem>>, %arg5: memref<128x128xbf16, #tpu.memory_space<vmem>>, %arg6: memref<1x128xf32, #tpu.memory_space<vmem>>, %arg7: memref<1x128xf32, #tpu.memory_space<vmem>>, %arg8: memref<1x1xf32, #tpu.memory_space<vmem>>, %arg9: memref<8x1xf32, #tpu.memory_space<vmem>>, %arg10: memref<8x128xf32, #tpu.memory_space<vmem>>) attributes {dimension_semantics = [#tpu.dimension_semantics<parallel>, #tpu.dimension_semantics<arbitrary>], iteration_bounds = array<i64: 1, 1>, scalar_prefetch = 0 : i64, scratch_operands = 1 : i64, tpu.core_type = #tpu.core_type<tc>, window_params = [{transform_indices = @transform_0, window_bounds = array<i64: 8, 128>}, {transform_indices = @transform_1, window_bounds = array<i64: 128, 128>}, {pipeline_mode = #tpu.pipeline_mode<synchronous>, transform_indices = @transform_2, window_bounds = array<i64: 1, 128>}, {pipeline_mode = #tpu.pipeline_mode<synchronous>, transform_indices = @transform_3, window_bounds = array<i64: 128, 128>}, {pipeline_mode = #tpu.pipeline_mode<synchronous>, transform_indices = @transform_4, window_bounds = array<i64: 1, 128>}, {pipeline_mode = #tpu.pipeline_mode<synchronous>, transform_indices = @transform_5, window_bounds = array<i64: 1, 128>}, {pipeline_mode = #tpu.pipeline_mode<synchronous>, transform_indices = @transform_6, window_bounds = array<i64: 1, 1>}, {transform_indices = @transform_7, window_bounds = array<i64: 8, 1>}]} {
    %c0_i32 = arith.constant 0 : i32
    %0 = arith.cmpi eq, %arg1, %c0_i32 : i32
    %1 = arith.extui %0 : i1 to i32
    %c0_i32_0 = arith.constant 0 : i32
    %2 = arith.cmpi ne, %1, %c0_i32_0 : i32
    scf.if %2 {
      %cst_10 = arith.constant 0.000000e+00 : f32
      %12 = vector.broadcast %cst_10 : f32 to vector<8x128xf32>
      %c0_11 = arith.constant 0 : index
      %c0_12 = arith.constant 0 : index
      %13 = vector.load %arg10[%c0_11, %c0_12] : memref<8x128xf32, #tpu.memory_space<vmem>>, vector<8x128xf32>
      tpu.vector_store %arg10[%c0_11, %c0_12], %12 {strides = array<i32>} : memref<8x128xf32, #tpu.memory_space<vmem>>, vector<8x128xf32>,
    } else {
    }
    %c0 = arith.constant 0 : index
    %c0_1 = arith.constant 0 : index
    %3 = vector.load %arg10[%c0, %c0_1] : memref<8x128xf32, #tpu.memory_space<vmem>>, vector<8x128xf32>
    %c0_2 = arith.constant 0 : index
    %c0_3 = arith.constant 0 : index
    %4 = vector.load %arg2[%c0_2, %c0_3] : memref<8x128xbf16, #tpu.memory_space<vmem>>, vector<8x128xbf16>
    %c0_4 = arith.constant 0 : index
    %c0_5 = arith.constant 0 : index
    %5 = vector.load %arg3[%c0_4, %c0_5] : memref<128x128xbf16, #tpu.memory_space<vmem>>, vector<128x128xbf16>
    %cst = arith.constant dense<0.000000e+00> : vector<8x128xf32>
    %6 = tpu.matmul %4, %5, %cst {dimension_numbers = #tpu.dot_dimension_numbers<[1], [0], [0], [1], [0, 0, 1, 1], [], []>} : vector<8x128xbf16>, vector<128x128xbf16>, vector<8x128xf32> -> vector<8x128xf32>
    %7 = arith.addf %3, %6 : vector<8x128xf32>
    %c0_6 = arith.constant 0 : index
    %c0_7 = arith.constant 0 : index
    %8 = vector.load %arg10[%c0_6, %c0_7] : memref<8x128xf32, #tpu.memory_space<vmem>>, vector<8x128xf32>
    tpu.vector_store %arg10[%c0_6, %c0_7], %7 {strides = array<i32>} : memref<8x128xf32, #tpu.memory_space<vmem>>, vector<8x128xf32>,
    %c0_i32_8 = arith.constant 0 : i32
    %9 = arith.cmpi eq, %arg1, %c0_i32_8 : i32
    %10 = arith.extui %9 : i1 to i32
    %c0_i32_9 = arith.constant 0 : i32
    %11 = arith.cmpi ne, %10, %c0_i32_9 : i32
    scf.if %11 {
      %c0_10 = arith.constant 0 : index
      %c0_11 = arith.constant 0 : index
      %12 = vector.load %arg10[%c0_10, %c0_11] : memref<8x128xf32, #tpu.memory_space<vmem>>, vector<8x128xf32>
      %c0_12 = arith.constant 0 : index
      %c0_13 = arith.constant 0 : index
      %13 = vector.load %arg4[%c0_12, %c0_13] : memref<1x128xf32, #tpu.memory_space<vmem>>, vector<1x128xf32>
      %14 = vector.broadcast %13 : vector<1x128xf32> to vector<8x128xf32>
      %15 = arith.addf %12, %14 : vector<8x128xf32>
      %cst_14 = arith.constant 0.000000e+00 : f32
      %16 = vector.broadcast %cst_14 : f32 to vector<8x128xf32>
      %17 = arith.maximumf %15, %16 : vector<8x128xf32>
      %18 = arith.truncf %17 : vector<8x128xf32> to vector<8x128xbf16>
      %c0_15 = arith.constant 0 : index
      %c0_16 = arith.constant 0 : index
      %19 = vector.load %arg5[%c0_15, %c0_16] : memref<128x128xbf16, #tpu.memory_space<vmem>>, vector<128x128xbf16>
      %cst_17 = arith.constant dense<0.000000e+00> : vector<8x128xf32>
      %20 = tpu.matmul %18, %19, %cst_17 {dimension_numbers = #tpu.dot_dimension_numbers<[1], [0], [0], [1], [0, 0, 1, 1], [], []>} : vector<8x128xbf16>, vector<128x128xbf16>, vector<8x128xf32> -> vector<8x128xf32>
      %c0_18 = arith.constant 0 : index
      %c0_19 = arith.constant 0 : index
      %21 = vector.load %arg6[%c0_18, %c0_19] : memref<1x128xf32, #tpu.memory_space<vmem>>, vector<1x128xf32>
      %22 = vector.broadcast %21 : vector<1x128xf32> to vector<8x128xf32>
      %23 = arith.addf %20, %22 : vector<8x128xf32>
      %cst_20 = arith.constant 0.000000e+00 : f32
      %24 = vector.broadcast %cst_20 : f32 to vector<8x128xf32>
      %25 = arith.maximumf %23, %24 : vector<8x128xf32>
      %c0_21 = arith.constant 0 : index
      %c0_22 = arith.constant 0 : index
      %26 = vector.load %arg7[%c0_21, %c0_22] : memref<1x128xf32, #tpu.memory_space<vmem>>, vector<1x128xf32>
      %27 = vector.broadcast %26 : vector<1x128xf32> to vector<8x128xf32>
      %28 = arith.mulf %25, %27 : vector<8x128xf32>
      %cst_23 = arith.constant dense<0.000000e+00> : vector<8xf32>
      %29 = vector.multi_reduction <add>, %28, %cst_23 [1] : vector<8x128xf32> to vector<8xf32>
      %30 = vector.shape_cast %29 : vector<8xf32> to vector<8x1xf32>
      %c0_24 = arith.constant 0 : index
      %c0_25 = arith.constant 0 : index
      %31 = vector.load %arg8[%c0_24, %c0_25] : memref<1x1xf32, #tpu.memory_space<vmem>>, vector<1x1xf32>
      %32 = vector.broadcast %31 : vector<1x1xf32> to vector<8x1xf32>
      %33 = arith.addf %30, %32 : vector<8x1xf32>
      %cst_26 = arith.constant 0.000000e+00 : f32
      %34 = vector.broadcast %cst_26 : f32 to vector<8x1xf32>
      %35 = arith.subf %34, %33 : vector<8x1xf32>
      %36 = math.exp %35 : vector<8x1xf32>
      %cst_27 = arith.constant 1.000000e+00 : f32
      %37 = vector.broadcast %cst_27 : f32 to vector<8x1xf32>
      %38 = arith.addf %37, %36 : vector<8x1xf32>
      %39 = tpu.reciprocal %38 {approx = true} : vector<8x1xf32> -> vector<8x1xf32>
      %c0_28 = arith.constant 0 : index
      %c0_29 = arith.constant 0 : index
      %40 = vector.load %arg9[%c0_28, %c0_29] : memref<8x1xf32, #tpu.memory_space<vmem>>, vector<8x1xf32>
      tpu.vector_store %arg9[%c0_28, %c0_29], %39 {strides = array<i32>} : memref<8x1xf32, #tpu.memory_space<vmem>>, vector<8x1xf32>,
    } else {
    }
    return
  }
  func.func @transform_0(%arg0: i32, %arg1: i32) -> (i32, i32) {
    %c0_i32 = arith.constant 0 : i32
    return %arg0, %arg1 : i32, i32
  }
  func.func @transform_1(%arg0: i32, %arg1: i32) -> (i32, i32) {
    %c0_i32 = arith.constant 0 : i32
    %c0_i32_0 = arith.constant 0 : i32
    return %arg1, %c0_i32 : i32, i32
  }
  func.func @transform_2(%arg0: i32, %arg1: i32) -> (i32, i32) {
    %c0_i32 = arith.constant 0 : i32
    %c0_i32_0 = arith.constant 0 : i32
    %c0_i32_1 = arith.constant 0 : i32
    return %c0_i32, %c0_i32_0 : i32, i32
  }
  func.func @transform_3(%arg0: i32, %arg1: i32) -> (i32, i32) {
    %c0_i32 = arith.constant 0 : i32
    %c0_i32_0 = arith.constant 0 : i32
    %c0_i32_1 = arith.constant 0 : i32
    return %c0_i32, %c0_i32_0 : i32, i32
  }
  func.func @transform_4(%arg0: i32, %arg1: i32) -> (i32, i32) {
    %c0_i32 = arith.constant 0 : i32
    %c0_i32_0 = arith.constant 0 : i32
    %c0_i32_1 = arith.constant 0 : i32
    return %c0_i32, %c0_i32_0 : i32, i32
  }
  func.func @transform_5(%arg0: i32, %arg1: i32) -> (i32, i32) {
    %c0_i32 = arith.constant 0 : i32
    %c0_i32_0 = arith.constant 0 : i32
    %c0_i32_1 = arith.constant 0 : i32
    return %c0_i32, %c0_i32_0 : i32, i32
  }
  func.func @transform_6(%arg0: i32, %arg1: i32) -> (i32, i32) {
    %c0_i32 = arith.constant 0 : i32
    %c0_i32_0 = arith.constant 0 : i32
    %c0_i32_1 = arith.constant 0 : i32
    return %c0_i32, %c0_i32_0 : i32, i32
  }
  func.func @transform_7(%arg0: i32, %arg1: i32) -> (i32, i32) {
    %c0_i32 = arith.constant 0 : i32
    %c0_i32_0 = arith.constant 0 : i32
    return %arg0, %c0_i32 : i32, i32
  }
}

</mosaic_0001>

<llo_original>
// kernel: adversarial_network_forward.1
$region0: #{adversarial_network_forward.1}
  #allocation0 [shape = 'u32[]', space=smem, size = 0x4, offset = 0x4, fixed_abs, tag = 'smem constant byte address 0x4 - core index']
  #allocation1 [shape = 'u32[144,128]{1,0:T(1,128)}', space=vmem, size = 0x12000, scoped, tag = 'internal scratch']
  #allocation2 [shape = 'f32[8,128]{1,0:T(8,128)}', space=vmem, size = 0x1000, scoped, tag = 'scratch operand']
  #allocation3 [shape = 'f32[1,1]{1,0:T(1,128)S(1)}', space=vmem, size = 0x200, scoped, tag = 'scoped memory for adversarial_network_forward.1']
  %s0 = inlined_call_operand.vmem [shape: bf16[8,128], index: 0, kind: input, shape index: {}]
  %s1 = inlined_call_operand.vmem [shape: bf16[128,128], index: 1, kind: input, shape index: {}]
  %s2 = inlined_call_operand.vmem [shape: f32[1,128], index: 2, kind: input, shape index: {}]
  %s3 = inlined_call_operand.vmem [shape: bf16[128,128], index: 3, kind: input, shape index: {}]
  %s4 = inlined_call_operand.vmem [shape: f32[1,128], index: 4, kind: input, shape index: {}]
  %s5 = inlined_call_operand.vmem [shape: f32[1,128], index: 5, kind: input, shape index: {}]
  %s6 = inlined_call_operand.<no memory space> [shape: f32[1,1], index: 6, kind: input, shape index: {}]
  %s7 = inlined_call_operand.vmem [shape: f32[8,1], index: 7, kind: output, shape index: {}]
  %s8 = sld [smem:[#allocation0]]
  $region46: #{adversarial_network_forward.1} parent=0
    _
  %s10 = ssub.s32 1, %s8
  %s11 = scalar_select 0, %s10, %s8
  %v12 = vstv %s6
  %13 = vst [vmem:[#allocation3] sm:$0x1] %v12
  // Predicated region
  $region2: #{adversarial_network_forward.1} parent=0 // pred_check
    _
  $region3: #{adversarial_network_forward.1} parent=0 // pred_check_branch
    %15 = sbr.rel (0) target = $region5
  $region4: #{adversarial_network_forward.1} parent=0 // pred_region
    _
  $region5: #{adversarial_network_forward.1} parent=0 // pred_fallthru
    _
  // Predicated region
  $region6: #{adversarial_network_forward.1} parent=0 // pred_check
    _
  $region7: #{adversarial_network_forward.1} parent=0 // pred_check_branch
    %17 = sbr.rel (0) target = $region9
  $region8: #{adversarial_network_forward.1} parent=0 // pred_region
    _
  $region9: #{adversarial_network_forward.1} parent=0 // pred_fallthru
    _
  // Predicated region
  $region10: #{adversarial_network_forward.1} parent=0 // pred_check
    _
  $region11: #{adversarial_network_forward.1} parent=0 // pred_check_branch
    %19 = sbr.rel (0) target = $region13
  $region12: #{adversarial_network_forward.1} parent=0 // pred_region
    _
  $region13: #{adversarial_network_forward.1} parent=0 // pred_fallthru
    _
  // Predicated region
  $region14: #{adversarial_network_forward.1} parent=0 // pred_check
    _
  $region15: #{adversarial_network_forward.1} parent=0 // pred_check_branch
    %21 = sbr.rel (0) target = $region17
  $region16: #{adversarial_network_forward.1} parent=0 // pred_region
    _
  $region17: #{adversarial_network_forward.1} parent=0 // pred_fallthru
    _
  // Predicated region
  $region18: #{adversarial_network_forward.1} parent=0 // pred_check
    _
  $region19: #{adversarial_network_forward.1} parent=0 // pred_check_branch
    %23 = sbr.rel (0) target = $region21
  $region20: #{adversarial_network_forward.1} parent=0 // pred_region
    _
  $region21: #{adversarial_network_forward.1} parent=0 // pred_fallthru
    _
  // Predicated region
  $region22: #{adversarial_network_forward.1} parent=0 // pred_check
    _
  $region23: #{adversarial_network_forward.1} parent=0 // pred_check_branch
    %25 = sbr.rel (0) target = $region25
  $region24: #{adversarial_network_forward.1} parent=0 // pred_region
    _
  $region25: #{adversarial_network_forward.1} parent=0 // pred_fallthru
    _
  // Predicated region
  $region26: #{adversarial_network_forward.1} parent=0 // pred_check
    _
  $region27: #{adversarial_network_forward.1} parent=0 // pred_check_branch
    %27 = sbr.rel (0) target = $region29
  $region28: #{adversarial_network_forward.1} parent=0 // pred_region
    _
  $region29: #{adversarial_network_forward.1} parent=0 // pred_fallthru
    _
  %p29 = scmp.eq.s32.totalorder 0, 0
  // Predicated region
  $region30: #{adversarial_network_forward.1} parent=0 // pred_check
    %p30 = pneg %p29
  $region31: #{adversarial_network_forward.1} parent=0 // pred_check_branch
    %32 = sbr.rel (%p30) target = $region33
  $region32: #{adversarial_network_forward.1} parent=0 // pred_region
    %33 = vst [vmem:[#allocation2] sm:$0xff] 0.0
  $region33: #{adversarial_network_forward.1} parent=0 // pred_fallthru
    _
  %v34 = vld [vmem:[#allocation2] sm:$0xff]
  %v35 = vld [vmem:[%s0] sm:$0xf]
  %v36 = vld [vmem:[%s1] sm:$0xf]
  %v37 = vld [vmem:[%s1 + $0x4] sm:$0xf]
  %v38 = vld [vmem:[%s1 + $0x8] sm:$0xf]
  %v39 = vld [vmem:[%s1 + $0xc] sm:$0xf]
  %v40 = vld [vmem:[%s1 + $0x10] sm:$0xf]
  %v41 = vld [vmem:[%s1 + $0x14] sm:$0xf]
  %v42 = vld [vmem:[%s1 + $0x18] sm:$0xf]
  %v43 = vld [vmem:[%s1 + $0x1c] sm:$0xf]
  %v44 = vld [vmem:[%s1 + $0x20] sm:$0xf]
  %v45 = vld [vmem:[%s1 + $0x24] sm:$0xf]
  %v46 = vld [vmem:[%s1 + $0x28] sm:$0xf]
  %v47 = vld [vmem:[%s1 + $0x2c] sm:$0xf]
  %v48 = vld [vmem:[%s1 + $0x30] sm:$0xf]
  %v49 = vld [vmem:[%s1 + $0x34] sm:$0xf]
  %v50 = vld [vmem:[%s1 + $0x38] sm:$0xf]
  %v51 = vld [vmem:[%s1 + $0x3c] sm:$0xf]
  %v68 = vunpack.c.l.b16 %v36
  %v69 = vunpack.c.l.b16 %v37
  %v70 = vunpack.c.l.b16 %v38
  %v71 = vunpack.c.l.b16 %v39
  %v72 = vunpack.c.l.b16 %v40
  %v73 = vunpack.c.l.b16 %v41
  %v74 = vunpack.c.l.b16 %v42
  %v75 = vunpack.c.l.b16 %v43
  %v76 = vunpack.c.l.b16 %v44
  %v77 = vunpack.c.l.b16 %v45
  %v78 = vunpack.c.l.b16 %v46
  %v79 = vunpack.c.l.b16 %v47
  %v80 = vunpack.c.l.b16 %v48
  %v81 = vunpack.c.l.b16 %v49
  %v82 = vunpack.c.l.b16 %v50
  %v83 = vunpack.c.l.b16 %v51
  %v84 = vpack.c.b16 %v69, %v68
  %v85 = vpack.c.b16 %v71, %v70
  %v86 = vpack.c.b16 %v73, %v72
  %v87 = vpack.c.b16 %v75, %v74
  %v88 = vpack.c.b16 %v77, %v76
  %v89 = vpack.c.b16 %v79, %v78
  %v90 = vpack.c.b16 %v81, %v80
  %v91 = vpack.c.b16 %v83, %v82
  %100 = vmatprep.subr.bf16.mxu0 0
  %101 = vmatpush1.bf16.msra.mxu0 %v91
  %102 = vmatprep.subr.bf16.mxu0 0
  %103 = vmatpush1.bf16.msra.mxu0 %v90
  %104 = vmatprep.subr.bf16.mxu0 0
  %105 = vmatpush1.bf16.msra.mxu0 %v89
  %106 = vmatprep.subr.bf16.mxu0 0
  %107 = vmatpush1.bf16.msra.mxu0 %v88
  %108 = vmatprep.subr.bf16.mxu0 0
  %109 = vmatpush1.bf16.msra.mxu0 %v87
  %110 = vmatprep.subr.bf16.mxu0 0
  %111 = vmatpush1.bf16.msra.mxu0 %v86
  %112 = vmatprep.subr.bf16.mxu0 0
  %113 = vmatpush1.bf16.msra.mxu0 %v85
  %114 = vmatprep.subr.bf16.mxu0 0
  %115 = vmatpush1.bf16.msra.mxu0 %v84
  %116 = vmatprep.subr.bf16.mxu0 0
  %117 = vmatpush2.bf16.msra.mxu0 0
  %118 = vmatprep.subr.bf16.mxu0 0
  %119 = vmatpush2.bf16.msra.mxu0 0
  %120 = vmatprep.subr.bf16.mxu0 0
  %121 = vmatpush2.bf16.msra.mxu0 0
  %122 = vmatprep.subr.bf16.mxu0 0
  %123 = vmatpush2.bf16.msra.mxu0 0
  %124 = vmatprep.subr.bf16.mxu0 0
  %125 = vmatpush2.bf16.msra.mxu0 0
  %126 = vmatprep.subr.bf16.mxu0 0
  %127 = vmatpush2.bf16.msra.mxu0 0
  %128 = vmatprep.subr.bf16.mxu0 0
  %129 = vmatpush2.bf16.msra.mxu0 0
  %130 = vmatprep.subr.bf16.mxu0 0
  %131 = vmatpush2.bf16.msra.mxu0 0
  %132 = vmatprep.mubr.bf16.mxu0 0
  %133 = vmatmul.mubr.bf16.gmra.mxu0 %v35
  %v134 = vpop.f32.mrf.mxu0
  %v135 = vadd.f32 0.0, %v134
  %v136 = vpop.f32.mrf.mxu0
  %v137 = vpop.f32.mrf.mxu0
  %v138 = vpop.f32.mrf.mxu0
  %139 = vdwg.mxu0
  %v140 = vadd.f32 %v34, %v135
  %141 = vst [vmem:[#allocation2] sm:$0xff] %v140
  // Predicated region
  $region34: #{adversarial_network_forward.1} parent=0 // pred_check
    %p142 = pneg %p29
  $region35: #{adversarial_network_forward.1} parent=0 // pred_check_branch
    %144 = sbr.rel (%p142) target = $region37
  $region36: #{adversarial_network_forward.1} parent=0 // pred_region
    %v145 = vld [vmem:[#allocation2] sm:$0xff]
    %v146 = vld [vmem:[%s2] sm:$0x1]
    %v148 = vlaneseq
    %v149 = vshrl.u32 %v148, 7
    %v150 = vsub.s32 0, %v149
    %v151 = vrot.slane %v146, %v150
    %v153 = vadd.f32 %v145, %v151
    %v154 = vmax.f32 %v153, 0.0
    %v155 = vpack.c.bf16 %v154, %v154
    %v156 = vld [vmem:[%s3] sm:$0xf]
    %v157 = vld [vmem:[%s3 + $0x4] sm:$0xf]
    %v158 = vld [vmem:[%s3 + $0x8] sm:$0xf]
    %v159 = vld [vmem:[%s3 + $0xc] sm:$0xf]
    %v160 = vld [vmem:[%s3 + $0x10] sm:$0xf]
    %v161 = vld [vmem:[%s3 + $0x14] sm:$0xf]
    %v162 = vld [vmem:[%s3 + $0x18] sm:$0xf]
    %v163 = vld [vmem:[%s3 + $0x1c] sm:$0xf]
    %v164 = vld [vmem:[%s3 + $0x20] sm:$0xf]
    %v165 = vld [vmem:[%s3 + $0x24] sm:$0xf]
    %v166 = vld [vmem:[%s3 + $0x28] sm:$0xf]
    %v167 = vld [vmem:[%s3 + $0x2c] sm:$0xf]
    %v168 = vld [vmem:[%s3 + $0x30] sm:$0xf]
    %v169 = vld [vmem:[%s3 + $0x34] sm:$0xf]
    %v170 = vld [vmem:[%s3 + $0x38] sm:$0xf]
    %v171 = vld [vmem:[%s3 + $0x3c] sm:$0xf]
    %v172 = vld [vmem:[%s4] sm:$0x1]
    %v174 = vlaneseq
    %v175 = vshrl.u32 %v174, 7
    %v176 = vsub.s32 0, %v175
    %v177 = vrot.slane %v172, %v176
    %v195 = vunpack.c.l.b16 %v156
    %v196 = vunpack.c.l.b16 %v157
    %v197 = vunpack.c.l.b16 %v158
    %v198 = vunpack.c.l.b16 %v159
    %v199 = vunpack.c.l.b16 %v160
    %v200 = vunpack.c.l.b16 %v161
    %v201 = vunpack.c.l.b16 %v162
    %v202 = vunpack.c.l.b16 %v163
    %v203 = vunpack.c.l.b16 %v164
    %v204 = vunpack.c.l.b16 %v165
    %v205 = vunpack.c.l.b16 %v166
    %v206 = vunpack.c.l.b16 %v167
    %v207 = vunpack.c.l.b16 %v168
    %v208 = vunpack.c.l.b16 %v169
    %v209 = vunpack.c.l.b16 %v170
    %v210 = vunpack.c.l.b16 %v171
    %v211 = vpack.c.b16 %v196, %v195
    %v212 = vpack.c.b16 %v198, %v197
    %v213 = vpack.c.b16 %v200, %v199
    %v214 = vpack.c.b16 %v202, %v201
    %v215 = vpack.c.b16 %v204, %v203
    %v216 = vpack.c.b16 %v206, %v205
    %v217 = vpack.c.b16 %v208, %v207
    %v218 = vpack.c.b16 %v210, %v209
    %227 = vmatprep.subr.bf16.mxu0 0
    %228 = vmatpush1.bf16.msra.mxu0 %v218
    %229 = vmatprep.subr.bf16.mxu0 0
    %230 = vmatpush1.bf16.msra.mxu0 %v217
    %231 = vmatprep.subr.bf16.mxu0 0
    %232 = vmatpush1.bf16.msra.mxu0 %v216
    %233 = vmatprep.subr.bf16.mxu0 0
    %234 = vmatpush1.bf16.msra.mxu0 %v215
    %235 = vmatprep.subr.bf16.mxu0 0
    %236 = vmatpush1.bf16.msra.mxu0 %v214
    %237 = vmatprep.subr.bf16.mxu0 0
    %238 = vmatpush1.bf16.msra.mxu0 %v213
    %239 = vmatprep.subr.bf16.mxu0 0
    %240 = vmatpush1.bf16.msra.mxu0 %v212
    %241 = vmatprep.subr.bf16.mxu0 0
    %242 = vmatpush1.bf16.msra.mxu0 %v211
    %243 = vmatprep.subr.bf16.mxu0 0
    %244 = vmatpush2.bf16.msra.mxu0 0
    %245 = vmatprep.subr.bf16.mxu0 0
    %246 = vmatpush2.bf16.msra.mxu0 0
    %247 = vmatprep.subr.bf16.mxu0 0
    %248 = vmatpush2.bf16.msra.mxu0 0
    %249 = vmatprep.subr.bf16.mxu0 0
    %250 = vmatpush2.bf16.msra.mxu0 0
    %251 = vmatprep.subr.bf16.mxu0 0
    %252 = vmatpush2.bf16.msra.mxu0 0
    %253 = vmatprep.subr.bf16.mxu0 0
    %254 = vmatpush2.bf16.msra.mxu0 0
    %255 = vmatprep.subr.bf16.mxu0 0
    %256 = vmatpush2.bf16.msra.mxu0 0
    %257 = vmatprep.subr.bf16.mxu0 0
    %258 = vmatpush2.bf16.msra.mxu0 0
    %259 = vmatprep.mubr.bf16.mxu0 0
    %260 = vmatmul.mubr.bf16.gmra.mxu0 %v155
    %v261 = vpop.f32.mrf.mxu0
    %v262 = vadd.f32 %v177, %v261
    %v263 = vpop.f32.mrf.mxu0
    %v264 = vpop.f32.mrf.mxu0
    %v265 = vpop.f32.mrf.mxu0
    %266 = vdwg.mxu0
    %v267 = vmax.f32 %v262, 0.0
    %v268 = vld [vmem:[%s5] sm:$0x1]
    %v270 = vlaneseq
    %v271 = vshrl.u32 %v270, 7
    %v272 = vsub.s32 0, %v271
    %v273 = vrot.slane %v268, %v272
    %v275 = vmul.f32 %v267, %v273
    %276 = vadd.xlane.f32.xlu0 %v275
    %v277 = vpop.xlane.xlu0 %276
    %v278 = vld [vmem:[#allocation3] sm:$0x1]
    %v280 = vlaneseq
    %v281 = vshrl.u32 %v280, 7
    %v282 = vsub.s32 0, %v281
    %v283 = vrot.slane %v278, %v282
    %v285 = vadd.f32 %v277, %v283
    %v286 = vsub.f32 0.0, %v285
    %v287 = vmul.f32 %v286, 1.442695
    %v288 = vpow.pop %v287
    %v289 = vadd.f32 %v288, 1.0
    %v290 = vrcp.pop %v289
    %vm291 = vcmask 7168
    %292 = vst.msk [vmem:[%s7] sm:$0xff] %vm291, %v290
  $region37: #{adversarial_network_forward.1} parent=0 // pred_fallthru
    _
  // Predicated region
  $region38: #{adversarial_network_forward.1} parent=0 // pred_check
    _
  $region39: #{adversarial_network_forward.1} parent=0 // pred_check_branch
    %294 = sbr.rel (0) target = $region41
  $region40: #{adversarial_network_forward.1} parent=0 // pred_region
    _
  $region41: #{adversarial_network_forward.1} parent=0 // pred_fallthru
    _
  // Predicated region
  $region42: #{adversarial_network_forward.1} parent=0 // pred_check
    _
  $region43: #{adversarial_network_forward.1} parent=0 // pred_check_branch
    %296 = sbr.rel (0) target = $region45
  $region44: #{adversarial_network_forward.1} parent=0 // pred_region
    _
  $region45: #{adversarial_network_forward.1} parent=0 // pred_fallthru
    _

</llo_original>
